<compile_context>
chip_gen: v5e
topology: v5e:2x2
jax: 0.10.0
libtpu: 0.0.40
codegen_flags: <defaults>
</compile_context>

<pallas_src>
import functools

import jax
import jax.numpy as jnp
from jax.experimental import pallas as pl
from jax.experimental.pallas import tpu as pltpu


def _mha_seq_kernel(x_ref, pk_ref, pv_ref, win_ref, wo_ref,
                    y_ref, kout_ref, vout_ref, o_scratch,
                    *, h, m, k, v):
    """One decode step: fused projections, per-head attention, cache append."""
    hk = h * k

    # --- All projections (q, new-k, new-v for every head) in ONE MXU matmul.
    # win_ref is (d, h*k | h*k | h*v), packed lane-dense once in the wrapper.
    proj = jnp.dot(x_ref[...], win_ref[...],
                   preferred_element_type=jnp.float32)            # (1, h*(2k+v))

    # --- Cache append: copy old rows (independent of the compute below). ---
    kout_ref[:, :m, :] = pk_ref[...]
    vout_ref[:, :m, :] = pv_ref[...]

    for hh in range(h):                     # h is tiny and static -> unrolled
        q_h   = proj[:, hh * k:(hh + 1) * k]                      # (1, k)
        k_new = proj[:, hk + hh * k: hk + (hh + 1) * k]           # (1, k)
        v_new = proj[:, 2 * hk + hh * v: 2 * hk + (hh + 1) * v]   # (1, v)

        # New-row writeback (never read back inside the kernel).
        kout_ref[hh, m:m + 1, :] = k_new.astype(kout_ref.dtype)
        vout_ref[hh, m:m + 1, :] = v_new.astype(vout_ref.dtype)

        # Attention over the OLD rows straight from the input tiles, plus the
        # in-register new-token contribution (no VMEM store->load RAW).
        K_old = pk_ref[hh].astype(jnp.float32)                    # (m, k)
        V_old = pv_ref[hh].astype(jnp.float32)                    # (m, v)

        # logits on VPU (broadcast mul) + XLU (lane reduce); no MXU push.
        logits_old = jnp.sum(K_old * q_h, axis=-1, keepdims=True)   # (m, 1)
        logit_new  = jnp.sum(q_h * k_new, axis=-1, keepdims=True)   # (1, 1)

        # Numerically stable softmax over the m+1 keys (no mask, denom >= 1).
        lmax  = jnp.maximum(jnp.max(logits_old, axis=0, keepdims=True),
                            logit_new)                               # (1, 1)
        p_old = jnp.exp(logits_old - lmax)                           # (m, 1)
        p_new = jnp.exp(logit_new - lmax)                            # (1, 1)
        denom = jnp.sum(p_old, axis=0, keepdims=True) + p_new        # (1, 1)
        inv   = pl.reciprocal(denom, approx=False)                   # exact

        # AV on VPU (broadcast mul) + XLU (sublane reduce); no MXU push.
        o_h = (jnp.sum(p_old * V_old, axis=0, keepdims=True)
               + p_new * v_new) * inv                                # (1, v)

        # Static lane-slice write into scratch instead of jnp.concatenate.
        o_scratch[:, hh * v:(hh + 1) * v] = o_h

    # --- Output projection: heads folded into a single 2-D matmul. ---
    y = jnp.dot(o_scratch[...], wo_ref[...], preferred_element_type=jnp.float32)
    y_ref[...] = y.astype(y_ref.dtype)                               # (1, d)


def pack_mha_weights(Wq, Wk, Wv, Wo, dtype=None):
    """Pack weights ONCE (at init), not per decode step.

    Returns:
      W_in: (d, h*k + h*k + h*v)  -> one matmul gives q, new-k, new-v.
      Wo2:  (h*v, d)              -> one matmul gives y (sums over heads).
    Optionally casts to `dtype` (e.g. jnp.bfloat16) to halve weight HBM bytes;
    accumulation inside the kernel stays f32.
    """
    h, d, k = Wq.shape
    v = Wv.shape[2]
    Wq2 = jnp.transpose(Wq, (1, 0, 2)).reshape(d, h * k)
    Wk2 = jnp.transpose(Wk, (1, 0, 2)).reshape(d, h * k)
    Wv2 = jnp.transpose(Wv, (1, 0, 2)).reshape(d, h * v)
    W_in = jnp.concatenate([Wq2, Wk2, Wv2], axis=1)
    Wo2 = Wo.reshape(h * v, d)
    if dtype is not None:
        W_in = W_in.astype(dtype)
        Wo2 = Wo2.astype(dtype)
    return W_in, Wo2


@jax.jit
def mha_sequential_step(x, prev_K, prev_V, W_in, Wo2):
    """One decode step. Takes PRE-PACKED weights (see pack_mha_weights)."""
    (d,) = x.shape
    h, m, k = prev_K.shape
    v = prev_V.shape[2]

    kernel = functools.partial(_mha_seq_kernel, h=h, m=m, k=k, v=v)
    vmem = pltpu.MemorySpace.VMEM

    y2, K_new, V_new = pl.pallas_call(
        kernel,
        out_shape=(
            jax.ShapeDtypeStruct((1, d), x.dtype),
            jax.ShapeDtypeStruct((h, m + 1, k), prev_K.dtype),
            jax.ShapeDtypeStruct((h, m + 1, v), prev_V.dtype),
        ),
        in_specs=[
            pl.BlockSpec(memory_space=vmem),   # x
            pl.BlockSpec(memory_space=vmem),   # prev_K
            pl.BlockSpec(memory_space=vmem),   # prev_V
            pl.BlockSpec(memory_space=vmem),   # W_in (packed)
            pl.BlockSpec(memory_space=vmem),   # Wo2  (packed)
        ],
        out_specs=(
            pl.BlockSpec(memory_space=vmem),   # y
            pl.BlockSpec(memory_space=vmem),   # K
            pl.BlockSpec(memory_space=vmem),   # V
        ),
        scratch_shapes=[pltpu.VMEM((1, h * v), jnp.float32)],
    )(x.reshape(1, d), prev_K, prev_V, W_in, Wo2)

    return y2.reshape(d), K_new, V_new


def _reference(x, prev_K, prev_V, Wq, Wk, Wv, Wo):
    q = jnp.einsum('d,hdk->hk', x, Wq)
    k_new = jnp.einsum('d,hdk->hk', x, Wk)
    v_new = jnp.einsum('d,hdv->hv', x, Wv)
    K = jnp.concatenate([prev_K, k_new[:, None, :]], axis=1)
    V = jnp.concatenate([prev_V, v_new[:, None, :]], axis=1)
    logits = jnp.einsum('hk,hmk->hm', q, K)
    w = jax.nn.softmax(logits, axis=-1)
    o = jnp.einsum('hm,hmv->hv', w, V)
    y = jnp.einsum('hv,hvd->d', o, Wo)
    return y, K, V


if __name__ == "__main__":
    # Small shapes consistent with the module: h=2, d=32, k=v=16, cache m=8.
    h, d, k, v, m = 2, 32, 16, 16, 8

    key = jax.random.PRNGKey(0)
    kx, kpk, kpv, kq, kk_, kv_, ko = jax.random.split(key, 7)

    x = jax.random.normal(kx, (d,), dtype=jnp.float32)
    prev_K = jax.random.normal(kpk, (h, m, k), dtype=jnp.float32)
    prev_V = jax.random.normal(kpv, (h, m, v), dtype=jnp.float32)
    Wq = jax.random.normal(kq, (h, d, k), dtype=jnp.float32)
    Wk = jax.random.normal(kk_, (h, d, k), dtype=jnp.float32)
    Wv = jax.random.normal(kv_, (h, d, v), dtype=jnp.float32)
    Wo = jax.random.normal(ko, (h, v, d), dtype=jnp.float32)

    # Pack weights ONCE (this is the init-time cost, not a per-step cost).
    W_in, Wo2 = pack_mha_weights(Wq, Wk, Wv, Wo)

    y, K_new, V_new = mha_sequential_step(x, prev_K, prev_V, W_in, Wo2)
    y, K_new, V_new = jax.block_until_ready((y, K_new, V_new))

    y_ref, K_ref, V_ref = _reference(x, prev_K, prev_V, Wq, Wk, Wv, Wo)
    assert jnp.allclose(K_new, K_ref, rtol=2e-3, atol=2e-3), "K cache mismatch"
    assert jnp.allclose(V_new, V_ref, rtol=2e-3, atol=2e-3), "V cache mismatch"
    assert jnp.allclose(y, y_ref, rtol=2e-3, atol=2e-3), "y mismatch"

    print("KERNEL_OK")
</pallas_src>

<mosaic_0001>
module attributes {stable_mosaic.version = 11 : i64} {
  func.func @_mha_seq_kernel(%arg0: memref<1x32xf32, #tpu.memory_space<vmem>>, %arg1: memref<2x8x16xf32, #tpu.memory_space<vmem>>, %arg2: memref<2x8x16xf32, #tpu.memory_space<vmem>>, %arg3: memref<32x96xf32, #tpu.memory_space<vmem>>, %arg4: memref<32x32xf32, #tpu.memory_space<vmem>>, %arg5: memref<1x32xf32, #tpu.memory_space<vmem>>, %arg6: memref<2x9x16xf32, #tpu.memory_space<vmem>>, %arg7: memref<2x9x16xf32, #tpu.memory_space<vmem>>, %arg8: memref<1x32xf32, #tpu.memory_space<vmem>>) attributes {dimension_semantics = [], scalar_prefetch = 0 : i64, scratch_operands = 1 : i64, tpu.core_type = #tpu.core_type<tc>} {
    %c0 = arith.constant 0 : index
    %c0_0 = arith.constant 0 : index
    %0 = vector.load %arg0[%c0, %c0_0] : memref<1x32xf32, #tpu.memory_space<vmem>>, vector<1x32xf32>
    %c0_1 = arith.constant 0 : index
    %c0_2 = arith.constant 0 : index
    %1 = vector.load %arg3[%c0_1, %c0_2] : memref<32x96xf32, #tpu.memory_space<vmem>>, vector<32x96xf32>
    %cst = arith.constant dense<0.000000e+00> : vector<1x96xf32>
    %2 = tpu.matmul %0, %1, %cst {dimension_numbers = #tpu.dot_dimension_numbers<[1], [0], [0], [1], [0, 0, 1, 1], [], []>} : vector<1x32xf32>, vector<32x96xf32>, vector<1x96xf32> -> vector<1x96xf32>
    %c0_3 = arith.constant 0 : index
    %c0_4 = arith.constant 0 : index
    %c0_5 = arith.constant 0 : index
    %3 = vector.load %arg1[%c0_3, %c0_4, %c0_5] : memref<2x8x16xf32, #tpu.memory_space<vmem>>, vector<2x8x16xf32>
    %c0_6 = arith.constant 0 : index
    %c0_7 = arith.constant 0 : index
    %c0_8 = arith.constant 0 : index
    %4 = vector.load %arg6[%c0_6, %c0_7, %c0_8] : memref<2x9x16xf32, #tpu.memory_space<vmem>>, vector<2x8x16xf32>
    tpu.vector_store %arg6[%c0_6, %c0_7, %c0_8], %3 {strides = array<i32>} : memref<2x9x16xf32, #tpu.memory_space<vmem>>, vector<2x8x16xf32>,
    %c0_9 = arith.constant 0 : index
    %c0_10 = arith.constant 0 : index
    %c0_11 = arith.constant 0 : index
    %5 = vector.load %arg2[%c0_9, %c0_10, %c0_11] : memref<2x8x16xf32, #tpu.memory_space<vmem>>, vector<2x8x16xf32>
    %c0_12 = arith.constant 0 : index
    %c0_13 = arith.constant 0 : index
    %c0_14 = arith.constant 0 : index
    %6 = vector.load %arg7[%c0_12, %c0_13, %c0_14] : memref<2x9x16xf32, #tpu.memory_space<vmem>>, vector<2x8x16xf32>
    tpu.vector_store %arg7[%c0_12, %c0_13, %c0_14], %5 {strides = array<i32>} : memref<2x9x16xf32, #tpu.memory_space<vmem>>, vector<2x8x16xf32>,
    %7 = vector.extract_strided_slice %2 {offsets = [0, 0], sizes = [1, 16], strides = [1, 1]} : vector<1x96xf32> to vector<1x16xf32>
    %8 = vector.extract_strided_slice %2 {offsets = [0, 32], sizes = [1, 16], strides = [1, 1]} : vector<1x96xf32> to vector<1x16xf32>
    %9 = vector.extract_strided_slice %2 {offsets = [0, 64], sizes = [1, 16], strides = [1, 1]} : vector<1x96xf32> to vector<1x16xf32>
    %c0_15 = arith.constant 0 : index
    %c8 = arith.constant 8 : index
    %c0_16 = arith.constant 0 : index
    %10 = vector.load %arg6[%c0_15, %c8, %c0_16] : memref<2x9x16xf32, #tpu.memory_space<vmem>>, vector<1x1x16xf32>
    %11 = vector.shape_cast %10 : vector<1x1x16xf32> to vector<1x16xf32>
    %12 = vector.shape_cast %8 : vector<1x16xf32> to vector<1x1x16xf32>
    tpu.vector_store %arg6[%c0_15, %c8, %c0_16], %12 {strides = array<i32>} : memref<2x9x16xf32, #tpu.memory_space<vmem>>, vector<1x1x16xf32>,
    %c0_17 = arith.constant 0 : index
    %c8_18 = arith.constant 8 : index
    %c0_19 = arith.constant 0 : index
    %13 = vector.load %arg7[%c0_17, %c8_18, %c0_19] : memref<2x9x16xf32, #tpu.memory_space<vmem>>, vector<1x1x16xf32>
    %14 = vector.shape_cast %13 : vector<1x1x16xf32> to vector<1x16xf32>
    %15 = vector.shape_cast %9 : vector<1x16xf32> to vector<1x1x16xf32>
    tpu.vector_store %arg7[%c0_17, %c8_18, %c0_19], %15 {strides = array<i32>} : memref<2x9x16xf32, #tpu.memory_space<vmem>>, vector<1x1x16xf32>,
    %c0_20 = arith.constant 0 : index
    %c0_21 = arith.constant 0 : index
    %c0_22 = arith.constant 0 : index
    %16 = vector.load %arg1[%c0_20, %c0_21, %c0_22] : memref<2x8x16xf32, #tpu.memory_space<vmem>>, vector<1x8x16xf32>
    %17 = vector.shape_cast %16 : vector<1x8x16xf32> to vector<8x16xf32>
    %c0_23 = arith.constant 0 : index
    %c0_24 = arith.constant 0 : index
    %c0_25 = arith.constant 0 : index
    %18 = vector.load %arg2[%c0_23, %c0_24, %c0_25] : memref<2x8x16xf32, #tpu.memory_space<vmem>>, vector<1x8x16xf32>
    %19 = vector.shape_cast %18 : vector<1x8x16xf32> to vector<8x16xf32>
    %20 = vector.broadcast %7 : vector<1x16xf32> to vector<8x16xf32>
    %21 = arith.mulf %17, %20 : vector<8x16xf32>
    %cst_26 = arith.constant dense<0.000000e+00> : vector<8xf32>
    %22 = vector.multi_reduction <add>, %21, %cst_26 [1] : vector<8x16xf32> to vector<8xf32>
    %23 = vector.shape_cast %22 : vector<8xf32> to vector<8x1xf32>
    %24 = arith.mulf %7, %8 : vector<1x16xf32>
    %cst_27 = arith.constant dense<0.000000e+00> : vector<1xf32>
    %25 = vector.multi_reduction <add>, %24, %cst_27 [1] : vector<1x16xf32> to vector<1xf32>
    %26 = vector.shape_cast %25 : vector<1xf32> to vector<1x1xf32>
    %cst_28 = arith.constant dense<0xFF800000> : vector<1xf32>
    %27 = vector.multi_reduction <maximumf>, %23, %cst_28 [0] : vector<8x1xf32> to vector<1xf32>
    %28 = vector.shape_cast %27 : vector<1xf32> to vector<1x1xf32>
    %29 = arith.maximumf %28, %26 : vector<1x1xf32>
    %30 = vector.broadcast %29 : vector<1x1xf32> to vector<8x1xf32>
    %31 = arith.subf %23, %30 : vector<8x1xf32>
    %32 = math.exp %31 : vector<8x1xf32>
    %33 = arith.subf %26, %29 : vector<1x1xf32>
    %34 = math.exp %33 : vector<1x1xf32>
    %cst_29 = arith.constant dense<0.000000e+00> : vector<1xf32>
    %35 = vector.multi_reduction <add>, %32, %cst_29 [0] : vector<8x1xf32> to vector<1xf32>
    %36 = vector.shape_cast %35 : vector<1xf32> to vector<1x1xf32>
    %37 = arith.addf %36, %34 : vector<1x1xf32>
    %38 = tpu.reciprocal %37 : vector<1x1xf32> -> vector<1x1xf32>
    %39 = vector.broadcast %32 : vector<8x1xf32> to vector<8x16xf32>
    %40 = arith.mulf %39, %19 : vector<8x16xf32>
    %cst_30 = arith.constant dense<0.000000e+00> : vector<16xf32>
    %41 = vector.multi_reduction <add>, %40, %cst_30 [0] : vector<8x16xf32> to vector<16xf32>
    %42 = vector.shape_cast %41 : vector<16xf32> to vector<1x16xf32>
    %43 = vector.broadcast %34 : vector<1x1xf32> to vector<1x16xf32>
    %44 = arith.mulf %43, %9 : vector<1x16xf32>
    %45 = arith.addf %42, %44 : vector<1x16xf32>
    %46 = vector.broadcast %38 : vector<1x1xf32> to vector<1x16xf32>
    %47 = arith.mulf %45, %46 : vector<1x16xf32>
    %c0_31 = arith.constant 0 : index
    %c0_32 = arith.constant 0 : index
    %48 = vector.load %arg8[%c0_31, %c0_32] : memref<1x32xf32, #tpu.memory_space<vmem>>, vector<1x16xf32>
    tpu.vector_store %arg8[%c0_31, %c0_32], %47 {strides = array<i32>} : memref<1x32xf32, #tpu.memory_space<vmem>>, vector<1x16xf32>,
    %49 = vector.extract_strided_slice %2 {offsets = [0, 16], sizes = [1, 16], strides = [1, 1]} : vector<1x96xf32> to vector<1x16xf32>
    %50 = vector.extract_strided_slice %2 {offsets = [0, 48], sizes = [1, 16], strides = [1, 1]} : vector<1x96xf32> to vector<1x16xf32>
    %51 = vector.extract_strided_slice %2 {offsets = [0, 80], sizes = [1, 16], strides = [1, 1]} : vector<1x96xf32> to vector<1x16xf32>
    %c1 = arith.constant 1 : index
    %c8_33 = arith.constant 8 : index
    %c0_34 = arith.constant 0 : index
    %52 = vector.load %arg6[%c1, %c8_33, %c0_34] : memref<2x9x16xf32, #tpu.memory_space<vmem>>, vector<1x1x16xf32>
    %53 = vector.shape_cast %52 : vector<1x1x16xf32> to vector<1x16xf32>
    %54 = vector.shape_cast %50 : vector<1x16xf32> to vector<1x1x16xf32>
    tpu.vector_store %arg6[%c1, %c8_33, %c0_34], %54 {strides = array<i32>} : memref<2x9x16xf32, #tpu.memory_space<vmem>>, vector<1x1x16xf32>,
    %c1_35 = arith.constant 1 : index
    %c8_36 = arith.constant 8 : index
    %c0_37 = arith.constant 0 : index
    %55 = vector.load %arg7[%c1_35, %c8_36, %c0_37] : memref<2x9x16xf32, #tpu.memory_space<vmem>>, vector<1x1x16xf32>
    %56 = vector.shape_cast %55 : vector<1x1x16xf32> to vector<1x16xf32>
    %57 = vector.shape_cast %51 : vector<1x16xf32> to vector<1x1x16xf32>
    tpu.vector_store %arg7[%c1_35, %c8_36, %c0_37], %57 {strides = array<i32>} : memref<2x9x16xf32, #tpu.memory_space<vmem>>, vector<1x1x16xf32>,
    %c1_38 = arith.constant 1 : index
    %c0_39 = arith.constant 0 : index
    %c0_40 = arith.constant 0 : index
    %58 = vector.load %arg1[%c1_38, %c0_39, %c0_40] : memref<2x8x16xf32, #tpu.memory_space<vmem>>, vector<1x8x16xf32>
    %59 = vector.shape_cast %58 : vector<1x8x16xf32> to vector<8x16xf32>
    %c1_41 = arith.constant 1 : index
    %c0_42 = arith.constant 0 : index
    %c0_43 = arith.constant 0 : index
    %60 = vector.load %arg2[%c1_41, %c0_42, %c0_43] : memref<2x8x16xf32, #tpu.memory_space<vmem>>, vector<1x8x16xf32>
    %61 = vector.shape_cast %60 : vector<1x8x16xf32> to vector<8x16xf32>
    %62 = vector.broadcast %49 : vector<1x16xf32> to vector<8x16xf32>
    %63 = arith.mulf %59, %62 : vector<8x16xf32>
    %cst_44 = arith.constant dense<0.000000e+00> : vector<8xf32>
    %64 = vector.multi_reduction <add>, %63, %cst_44 [1] : vector<8x16xf32> to vector<8xf32>
    %65 = vector.shape_cast %64 : vector<8xf32> to vector<8x1xf32>
    %66 = arith.mulf %49, %50 : vector<1x16xf32>
    %cst_45 = arith.constant dense<0.000000e+00> : vector<1xf32>
    %67 = vector.multi_reduction <add>, %66, %cst_45 [1] : vector<1x16xf32> to vector<1xf32>
    %68 = vector.shape_cast %67 : vector<1xf32> to vector<1x1xf32>
    %cst_46 = arith.constant dense<0xFF800000> : vector<1xf32>
    %69 = vector.multi_reduction <maximumf>, %65, %cst_46 [0] : vector<8x1xf32> to vector<1xf32>
    %70 = vector.shape_cast %69 : vector<1xf32> to vector<1x1xf32>
    %71 = arith.maximumf %70, %68 : vector<1x1xf32>
    %72 = vector.broadcast %71 : vector<1x1xf32> to vector<8x1xf32>
    %73 = arith.subf %65, %72 : vector<8x1xf32>
    %74 = math.exp %73 : vector<8x1xf32>
    %75 = arith.subf %68, %71 : vector<1x1xf32>
    %76 = math.exp %75 : vector<1x1xf32>
    %cst_47 = arith.constant dense<0.000000e+00> : vector<1xf32>
    %77 = vector.multi_reduction <add>, %74, %cst_47 [0] : vector<8x1xf32> to vector<1xf32>
    %78 = vector.shape_cast %77 : vector<1xf32> to vector<1x1xf32>
    %79 = arith.addf %78, %76 : vector<1x1xf32>
    %80 = tpu.reciprocal %79 : vector<1x1xf32> -> vector<1x1xf32>
    %81 = vector.broadcast %74 : vector<8x1xf32> to vector<8x16xf32>
    %82 = arith.mulf %81, %61 : vector<8x16xf32>
    %cst_48 = arith.constant dense<0.000000e+00> : vector<16xf32>
    %83 = vector.multi_reduction <add>, %82, %cst_48 [0] : vector<8x16xf32> to vector<16xf32>
    %84 = vector.shape_cast %83 : vector<16xf32> to vector<1x16xf32>
    %85 = vector.broadcast %76 : vector<1x1xf32> to vector<1x16xf32>
    %86 = arith.mulf %85, %51 : vector<1x16xf32>
    %87 = arith.addf %84, %86 : vector<1x16xf32>
    %88 = vector.broadcast %80 : vector<1x1xf32> to vector<1x16xf32>
    %89 = arith.mulf %87, %88 : vector<1x16xf32>
    %c0_49 = arith.constant 0 : index
    %c16 = arith.constant 16 : index
    %90 = vector.load %arg8[%c0_49, %c16] : memref<1x32xf32, #tpu.memory_space<vmem>>, vector<1x16xf32>
    tpu.vector_store %arg8[%c0_49, %c16], %89 {strides = array<i32>} : memref<1x32xf32, #tpu.memory_space<vmem>>, vector<1x16xf32>,
    %c0_50 = arith.constant 0 : index
    %c0_51 = arith.constant 0 : index
    %91 = vector.load %arg8[%c0_50, %c0_51] : memref<1x32xf32, #tpu.memory_space<vmem>>, vector<1x32xf32>
    %c0_52 = arith.constant 0 : index
    %c0_53 = arith.constant 0 : index
    %92 = vector.load %arg4[%c0_52, %c0_53] : memref<32x32xf32, #tpu.memory_space<vmem>>, vector<32x32xf32>
    %cst_54 = arith.constant dense<0.000000e+00> : vector<1x32xf32>
    %93 = tpu.matmul %91, %92, %cst_54 {dimension_numbers = #tpu.dot_dimension_numbers<[1], [0], [0], [1], [0, 0, 1, 1], [], []>} : vector<1x32xf32>, vector<32x32xf32>, vector<1x32xf32> -> vector<1x32xf32>
    %c0_55 = arith.constant 0 : index
    %c0_56 = arith.constant 0 : index
    %94 = vector.load %arg5[%c0_55, %c0_56] : memref<1x32xf32, #tpu.memory_space<vmem>>, vector<1x32xf32>
    tpu.vector_store %arg5[%c0_55, %c0_56], %93 {strides = array<i32>} : memref<1x32xf32, #tpu.memory_space<vmem>>, vector<1x32xf32>,
    return
  }
}

</mosaic_0001>

<llo_original>
// kernel: mha_sequential_step.1
$region0: #{mha_sequential_step.1}
  #allocation0 [shape = 'u32[]', space=smem, size = 0x4, offset = 0x4, fixed_abs, tag = 'smem constant byte address 0x4 - core index']
  #allocation1 [shape = 'u32[72,128]{1,0:T(1,128)}', space=vmem, size = 0x9000, scoped, tag = 'internal scratch']
  #allocation2 [shape = 'f32[1,32]{1,0:T(1,128)}', space=vmem, size = 0x200, scoped, tag = 'scratch operand']
  %s0 = inlined_call_operand.hbm [shape: f32[1,32], index: 0, kind: input, shape index: {}]
  %s1 = inlined_call_operand.hbm [shape: f32[2,8,16], index: 1, kind: input, shape index: {}]
  %s2 = inlined_call_operand.hbm [shape: f32[2,8,16], index: 2, kind: input, shape index: {}]
  %s3 = inlined_call_operand.hbm [shape: f32[32,96], index: 3, kind: input, shape index: {}]
  %s4 = inlined_call_operand.hbm [shape: f32[32,32], index: 4, kind: input, shape index: {}]
  %s5 = inlined_call_operand.hbm [shape: f32[1,32], index: 5, kind: output, shape index: {0}]
  %s6 = inlined_call_operand.vmem [shape: f32[2,9,16], index: 6, kind: output, shape index: {1}]
  %s7 = inlined_call_operand.vmem [shape: f32[2,9,16], index: 7, kind: output, shape index: {2}]
  %8 = xla_tuple %s5, %s6, %s7
  %s9 = sld [smem:[#allocation0]]
  $region66: #{mha_sequential_step.1} parent=0
    _
  %s11 = ssub.s32 1, %s9
  %s12 = scalar_select 0, %s11, %s9
  $region1: #{mha_sequential_step.1} parent=0
    #allocation3 [shape = 'u8[512]{0}', space=vmem, size = 0x400, scoped, tag = 'input window, operand 0, single buffered']
    #allocation4 [shape = 's32[1]{0}', space=sflag, size = 0x4, scoped, tag = 'scoped memory for mha_sequential_step.1']
    #allocation5 [shape = 's32[1]{0}', space=sflag, size = 0x4, scoped, tag = 'scoped memory for mha_sequential_step.1']
    #allocation6 [shape = 'u8[8192]{0}', space=vmem, size = 0x2000, scoped, tag = 'input window, operand 1, single buffered']
    #allocation7 [shape = 's32[1]{0}', space=sflag, size = 0x4, scoped, tag = 'scoped memory for mha_sequential_step.1']
    #allocation8 [shape = 'u8[8192]{0}', space=vmem, size = 0x2000, scoped, tag = 'input window, operand 2, single buffered']
    #allocation9 [shape = 'u8[16384]{0}', space=vmem, size = 0x4000, scoped, tag = 'input window, operand 3, single buffered']
    #allocation10 [shape = 's32[1]{0}', space=sflag, size = 0x4, scoped, tag = 'scoped memory for mha_sequential_step.1']
    #allocation11 [shape = 'u8[16384]{0}', space=vmem, size = 0x4000, scoped, tag = 'input window, operand 4, single buffered']
    #allocation12 [shape = 'u8[512]{0}', space=vmem, size = 0x400, scoped, tag = 'output window, operand 0, single buffered']
    %13 = vsyncpa [#allocation4], 0
    %14 = vsyncpa [#allocation7], 0
    %15 = vsyncpa [#allocation10], 0
    %16 = vsyncpa [#allocation5], 0
    // Predicated region
    $region2: #{mha_sequential_step.1} parent=1 // pred_check
      _
    $region3: #{mha_sequential_step.1} parent=1 // pred_check_branch
      %18 = sbr.rel (0) target = $region5
    $region4: #{mha_sequential_step.1} parent=1 // pred_region
      %20 = vsyncadd [#allocation4], 0
      %s22 = sshll.u32 %s0, 4
      %s23 = int_to_ptr.hbm [resolvable:$true] %s22
      %s24 = sshll.u32 [#allocation3], 4
      %s25 = int_to_ptr.vmem [resolvable:$true] %s24
      %27 = dma.hbm_to_vmem [thread:$0]  %s23, 16, %s25, [#allocation4]
    $region5: #{mha_sequential_step.1} parent=1 // pred_fallthru
      _
    // Predicated region
    $region6: #{mha_sequential_step.1} parent=1 // pred_check
      _
    $region7: #{mha_sequential_step.1} parent=1 // pred_check_branch
      %29 = sbr.rel (0) target = $region9
    $region8: #{mha_sequential_step.1} parent=1 // pred_region
      %31 = vsyncadd [#allocation7], 0
      %s32 = sshll.u32 %s1, 4
      %s33 = int_to_ptr.hbm [resolvable:$true] %s32
      %s34 = sshll.u32 [#allocation6], 4
      %s35 = int_to_ptr.vmem [resolvable:$true] %s34
      %40 = dma.hbm_to_vmem [thread:$0]  %s33, 256, %s35, [#allocation7], 128, 128, 8
    $region9: #{mha_sequential_step.1} parent=1 // pred_fallthru
      _
    // Predicated region
    $region10: #{mha_sequential_step.1} parent=1 // pred_check
      _
    $region11: #{mha_sequential_step.1} parent=1 // pred_check_branch
      %42 = sbr.rel (0) target = $region13
    $region12: #{mha_sequential_step.1} parent=1 // pred_region
      %44 = vsyncadd [#allocation7], 0
      %s45 = sshll.u32 %s2, 4
      %s46 = int_to_ptr.hbm [resolvable:$true] %s45
      %s47 = sshll.u32 [#allocation8], 4
      %s48 = int_to_ptr.vmem [resolvable:$true] %s47
      %53 = dma.hbm_to_vmem [thread:$0]  %s46, 256, %s48, [#allocation7], 128, 128, 8
    $region13: #{mha_sequential_step.1} parent=1 // pred_fallthru
      _
    // Predicated region
    $region14: #{mha_sequential_step.1} parent=1 // pred_check
      _
    $region15: #{mha_sequential_step.1} parent=1 // pred_check_branch
      %55 = sbr.rel (0) target = $region17
    $region16: #{mha_sequential_step.1} parent=1 // pred_region
      %57 = vsyncadd [#allocation10], 0
      %s58 = sshll.u32 %s3, 4
      %s59 = int_to_ptr.hbm [resolvable:$true] %s58
      %s60 = sshll.u32 [#allocation9], 4
      %s61 = int_to_ptr.vmem [resolvable:$true] %s60
      %66 = dma.hbm_to_vmem [thread:$0]  %s59, 512, %s61, [#allocation10], 128, 128, 8
    $region17: #{mha_sequential_step.1} parent=1 // pred_fallthru
      _
    // Predicated region
    $region18: #{mha_sequential_step.1} parent=1 // pred_check
      _
    $region19: #{mha_sequential_step.1} parent=1 // pred_check_branch
      %68 = sbr.rel (0) target = $region21
    $region20: #{mha_sequential_step.1} parent=1 // pred_region
      %70 = vsyncadd [#allocation10], 0
      %s71 = sshll.u32 %s4, 4
      %s72 = int_to_ptr.hbm [resolvable:$true] %s71
      %s73 = sshll.u32 [#allocation11], 4
      %s74 = int_to_ptr.vmem [resolvable:$true] %s73
      %79 = dma.hbm_to_vmem [thread:$0]  %s72, 512, %s74, [#allocation10], 128, 128, 8
    $region21: #{mha_sequential_step.1} parent=1 // pred_fallthru
      _
    // Predicated region
    $region22: #{mha_sequential_step.1} parent=1 // pred_check
      _
    $region23: #{mha_sequential_step.1} parent=1 // pred_check_branch
      %81 = sbr.rel (0) target = $region25
    $region24: #{mha_sequential_step.1} parent=1 // pred_region
      %83 = dma.done [#allocation4], 16
    $region25: #{mha_sequential_step.1} parent=1 // pred_fallthru
      _
    // Predicated region
    $region26: #{mha_sequential_step.1} parent=1 // pred_check
      _
    $region27: #{mha_sequential_step.1} parent=1 // pred_check_branch
      %85 = sbr.rel (0) target = $region29
    $region28: #{mha_sequential_step.1} parent=1 // pred_region
      %87 = dma.done [#allocation7], 256
    $region29: #{mha_sequential_step.1} parent=1 // pred_fallthru
      _
    // Predicated region
    $region30: #{mha_sequential_step.1} parent=1 // pred_check
      _
    $region31: #{mha_sequential_step.1} parent=1 // pred_check_branch
      %89 = sbr.rel (0) target = $region33
    $region32: #{mha_sequential_step.1} parent=1 // pred_region
      %91 = dma.done [#allocation7], 256
    $region33: #{mha_sequential_step.1} parent=1 // pred_fallthru
      _
    // Predicated region
    $region34: #{mha_sequential_step.1} parent=1 // pred_check
      _
    $region35: #{mha_sequential_step.1} parent=1 // pred_check_branch
      %93 = sbr.rel (0) target = $region37
    $region36: #{mha_sequential_step.1} parent=1 // pred_region
      %95 = dma.done [#allocation10], 512
    $region37: #{mha_sequential_step.1} parent=1 // pred_fallthru
      _
    // Predicated region
    $region38: #{mha_sequential_step.1} parent=1 // pred_check
      _
    $region39: #{mha_sequential_step.1} parent=1 // pred_check_branch
      %97 = sbr.rel (0) target = $region41
    $region40: #{mha_sequential_step.1} parent=1 // pred_region
      %99 = dma.done [#allocation10], 512
    $region41: #{mha_sequential_step.1} parent=1 // pred_fallthru
      _
    %v100 = vld [vmem:[#allocation3] sm:$0x1]
    %v101 = vld [vmem:[#allocation9] sm:$0xff]
    %v102 = vld [vmem:[#allocation9 + $0x8] sm:$0xff]
    %v103 = vld [vmem:[#allocation9 + $0x10] sm:$0xff]
    %v104 = vld [vmem:[#allocation9 + $0x18] sm:$0xff]
    %vm105 = vcmask 261120
    %v107 = vsel %vm105, %v100, 0
    %109 = vmatpush.msra.mxu0 0.0
    %110 = vmatpush.msra.mxu0 0.0
    %111 = vmatpush.msra.mxu0 0.0
    %112 = vmatpush.msra.mxu0 0.0
    %113 = vmatpush.msra.mxu0 0.0
    %114 = vmatpush.msra.mxu0 0.0
    %115 = vmatpush.msra.mxu0 0.0
    %116 = vmatpush.msra.mxu0 0.0
    %117 = vmatpush.msra.mxu0 0.0
    %118 = vmatpush.msra.mxu0 0.0
    %119 = vmatpush.msra.mxu0 0.0
    %120 = vmatpush.msra.mxu0 0.0
    %121 = vmatpush.msra.mxu0 %v104
    %122 = vmatpush.msra.mxu0 %v103
    %123 = vmatpush.msra.mxu0 %v102
    %124 = vmatpush.msra.mxu0 %v101
    %125 = vmatmul.f32.gmra.mxu0 %v107
    %v126 = vpop.f32.mrf.mxu0
    %v127 = vadd.f32 0.0, %v126
    %128 = vdwg.mxu0
    %v129 = vld [vmem:[#allocation6] sm:$0xff]
    %v130 = vld [vmem:[#allocation6 + $0x8] sm:$0xff]
    %vm131 = vcmask 130048
    %132 = vst.msk [vmem:[%s6] sm:$0xff] %vm131, %v129
    %133 = vst.msk [vmem:[%s6 + $0x10] sm:$0xff] %vm131, %v130
    %v134 = vld [vmem:[#allocation8] sm:$0xff]
    %v135 = vld [vmem:[#allocation8 + $0x8] sm:$0xff]
    %136 = vst.msk [vmem:[%s7] sm:$0xff] %vm131, %v134
    %137 = vst.msk [vmem:[%s7 + $0x10] sm:$0xff] %vm131, %v135
    %139 = vrot.lane.b32.xlu0 %v127, 96
    %v140 = vpop.permute.xlu0 %139
    %vm142 = vcmask 122880
    %143 = vst.msk [vmem:[%s6 + $0x8] sm:$0x1] %vm142, %v140
    %144 = vrot.lane.b32.xlu0 %v127, 64
    %v145 = vpop.permute.xlu0 %144
    %147 = vst.msk [vmem:[%s7 + $0x8] sm:$0x1] %vm142, %v145
    %v148 = vld [vmem:[#allocation6] sm:$0xff]
    %v149 = vld [vmem:[#allocation8] sm:$0xff]
    %v150 = vperm.slane %v127, 0
    %v151 = vmul.f32 %v148, %v150
    %v152 = vsel %vm131, %v151, 0.0
    %153 = vadd.xlane.f32.xlu0 %v152
    %v154 = vpop.xlane.xlu0 %153
    %v155 = vmul.f32 %v127, %v140
    %v156 = vsel %vm142, %v155, 0.0
    %157 = vadd.xlane.f32.xlu0 %v156
    %v158 = vpop.xlane.xlu0 %157
    %v159 = vrot.slane %v154, 4
    %v160 = vmax.f32 %v154, %v159
    %v161 = vrot.slane %v160, 2
    %v162 = vmax.f32 %v160, %v161
    %v163 = vrot.slane %v162, 1
    %v164 = vmax.f32 %v162, %v163
    %v165 = vmax.f32 %v164, %v158
    %v166 = vperm.slane %v165, 0
    %v167 = vsub.f32 %v154, %v166
    %v168 = vmul.f32 %v167, 1.442695
    %v169 = vpow.pop %v168
    %v170 = vsub.f32 %v158, %v165
    %v171 = vmul.f32 %v170, 1.442695
    %v172 = vpow.pop %v171
    %v173 = vrot.slane %v169, 4
    %v174 = vadd.f32 %v169, %v173
    %v175 = vrot.slane %v174, 2
    %v176 = vadd.f32 %v174, %v175
    %v177 = vrot.slane %v176, 1
    %v178 = vadd.f32 %v176, %v177
    %v179 = vadd.f32 %v178, %v172
    %v180 = vrcp.pop %v179
    %v181 = vmul.f32 %v179, %v180
    %v182 = vsub.f32 1.0, %v181
    %v183 = vmul.f32 %v180, %v182
    %v184 = vadd.f32 %v180, %v183
    %vm185 = vweird.f32 %v179
    %vm186 = vweird.f32 %v180
    %vm187 = vmor %vm185, %vm186
    %v188 = vsel %vm187, %v180, %v184
    %v189 = vand.u32 2147483647, %v179
    %vm190 = vcmp.eq.f32.partialorder %v189, 8.507059e+37
    %v191 = vand.u32 %v179, 2147483648
    %v192 = vor.u32 1.1754944e-38, %v191
    %v193 = vsel %vm190, %v192, %v188
    %v194 = vmul.f32 %v169, %v149
    %v195 = vsel %vm131, %v194, 0.0
    %v196 = vrot.slane %v195, 4
    %v197 = vadd.f32 %v195, %v196
    %v198 = vrot.slane %v197, 2
    %v199 = vadd.f32 %v197, %v198
    %v200 = vrot.slane %v199, 1
    %v201 = vadd.f32 %v199, %v200
    %v202 = vmul.f32 %v172, %v127
    %204 = vrot.lane.b32.xlu0 %v202, 64
    %v205 = vpop.permute.xlu0 %204
    %v207 = vadd.f32 %v201, %v205
    %v208 = vmul.f32 %v207, %v193
    %209 = vst.msk [vmem:[#allocation2] sm:$0x1] %vm142, %v208
    %210 = vrot.lane.b32.xlu0 %v127, 80
    %v211 = vpop.permute.xlu0 %210
    %s213 = scalar_lea.vmem %s6, 16
    %214 = vst.msk [vmem:[%s213 + $0x8] sm:$0x1] %vm142, %v211
    %215 = vrot.lane.b32.xlu0 %v127, 48
    %v216 = vpop.permute.xlu0 %215
    %s218 = scalar_lea.vmem %s7, 16
    %219 = vst.msk [vmem:[%s218 + $0x8] sm:$0x1] %vm142, %v216
    %s220 = scalar_lea.vmem [#allocation6], 8
    %v221 = vld [vmem:[%s220] sm:$0xff]
    %s222 = scalar_lea.vmem [#allocation8], 8
    %v223 = vld [vmem:[%s222] sm:$0xff]
    %225 = vrot.lane.b32.xlu0 %v150, 112
    %v226 = vpop.permute.xlu0 %225
    %v228 = vmul.f32 %v221, %v226
    %v229 = vsel %vm131, %v228, 0.0
    %230 = vadd.xlane.f32.xlu0 %v229
    %v231 = vpop.xlane.xlu0 %230
    %233 = vrot.lane.b32.xlu0 %v155, 112
    %v234 = vpop.permute.xlu0 %233
    %v236 = vsel %vm142, %v234, 0.0
    %237 = vadd.xlane.f32.xlu0 %v236
    %v238 = vpop.xlane.xlu0 %237
    %v239 = vrot.slane %v231, 4
    %v240 = vmax.f32 %v231, %v239
    %v241 = vrot.slane %v240, 2
    %v242 = vmax.f32 %v240, %v241
    %v243 = vrot.slane %v242, 1
    %v244 = vmax.f32 %v242, %v243
    %v245 = vmax.f32 %v244, %v238
    %v246 = vperm.slane %v245, 0
    %v247 = vsub.f32 %v231, %v246
    %v248 = vmul.f32 %v247, 1.442695
    %v249 = vpow.pop %v248
    %v250 = vsub.f32 %v238, %v245
    %v251 = vmul.f32 %v250, 1.442695
    %v252 = vpow.pop %v251
    %v253 = vrot.slane %v249, 4
    %v254 = vadd.f32 %v249, %v253
    %v255 = vrot.slane %v254, 2
    %v256 = vadd.f32 %v254, %v255
    %v257 = vrot.slane %v256, 1
    %v258 = vadd.f32 %v256, %v257
    %v259 = vadd.f32 %v258, %v252
    %v260 = vrcp.pop %v259
    %v261 = vmul.f32 %v259, %v260
    %v262 = vsub.f32 1.0, %v261
    %v263 = vmul.f32 %v260, %v262
    %v264 = vadd.f32 %v260, %v263
    %vm265 = vweird.f32 %v259
    %vm266 = vweird.f32 %v260
    %vm267 = vmor %vm265, %vm266
    %v268 = vsel %vm267, %v260, %v264
    %v269 = vand.u32 2147483647, %v259
    %vm270 = vcmp.eq.f32.partialorder %v269, 8.507059e+37
    %v271 = vand.u32 %v259, 2147483648
    %v272 = vor.u32 1.1754944e-38, %v271
    %v273 = vsel %vm270, %v272, %v268
    %v274 = vmul.f32 %v249, %v223
    %v275 = vsel %vm131, %v274, 0.0
    %v276 = vrot.slane %v275, 4
    %v277 = vadd.f32 %v275, %v276
    %v278 = vrot.slane %v277, 2
    %v279 = vadd.f32 %v277, %v278
    %v280 = vrot.slane %v279, 1
    %v281 = vadd.f32 %v279, %v280
    %v282 = vmul.f32 %v252, %v127
    %284 = vrot.lane.b32.xlu0 %v282, 48
    %v285 = vpop.permute.xlu0 %284
    %v287 = vadd.f32 %v281, %v285
    %v288 = vmul.f32 %v287, %v273
    %290 = vrot.lane.b32.xlu0 %v288, 16
    %v291 = vpop.permute.xlu0 %290
    %vm293 = vcmask 254080
    %294 = vst.msk [vmem:[#allocation2] sm:$0x1] %vm293, %v291
    %v295 = vld [vmem:[#allocation2] sm:$0x1]
    %v296 = vld [vmem:[#allocation11] sm:$0xff]
    %v297 = vld [vmem:[#allocation11 + $0x8] sm:$0xff]
    %v298 = vld [vmem:[#allocation11 + $0x10] sm:$0xff]
    %v299 = vld [vmem:[#allocation11 + $0x18] sm:$0xff]
    %v301 = vsel %vm105, %v295, 0
    %303 = vmatpush.msra.mxu0 0.0
    %304 = vmatpush.msra.mxu0 0.0
    %305 = vmatpush.msra.mxu0 0.0
    %306 = vmatpush.msra.mxu0 0.0
    %307 = vmatpush.msra.mxu0 0.0
    %308 = vmatpush.msra.mxu0 0.0
    %309 = vmatpush.msra.mxu0 0.0
    %310 = vmatpush.msra.mxu0 0.0
    %311 = vmatpush.msra.mxu0 0.0
    %312 = vmatpush.msra.mxu0 0.0
    %313 = vmatpush.msra.mxu0 0.0
    %314 = vmatpush.msra.mxu0 0.0
    %315 = vmatpush.msra.mxu0 %v299
    %316 = vmatpush.msra.mxu0 %v298
    %317 = vmatpush.msra.mxu0 %v297
    %318 = vmatpush.msra.mxu0 %v296
    %319 = vmatmul.f32.gmra.mxu0 %v301
    %v320 = vpop.f32.mrf.mxu0
    %v321 = vadd.f32 0.0, %v320
    %322 = vdwg.mxu0
    %vm323 = vcmask 253952
    %324 = vst.msk [vmem:[#allocation12] sm:$0x1] %vm323, %v321
    // Predicated region
    $region42: #{mha_sequential_step.1} parent=1 // pred_check
      _
    $region43: #{mha_sequential_step.1} parent=1 // pred_check_branch
      %326 = sbr.rel (0) target = $region45
    $region44: #{mha_sequential_step.1} parent=1 // pred_region
      %328 = vsyncadd [#allocation5], 0
      %s330 = sshll.u32 [#allocation12], 4
      %s331 = int_to_ptr.vmem [resolvable:$true] %s330
      %s332 = sshll.u32 %s5, 4
      %s333 = int_to_ptr.hbm [resolvable:$true] %s332
      %335 = dma.vmem_to_hbm [thread:$0]  %s331, 16, %s333, [#allocation5]
    $region45: #{mha_sequential_step.1} parent=1 // pred_fallthru
      _
    // Predicated region
    $region46: #{mha_sequential_step.1} parent=1 // pred_check
      _
    $region47: #{mha_sequential_step.1} parent=1 // pred_check_branch
      %337 = sbr.rel (0) target = $region49
    $region48: #{mha_sequential_step.1} parent=1 // pred_region
      _
    $region49: #{mha_sequential_step.1} parent=1 // pred_fallthru
      _
    // Predicated region
    $region50: #{mha_sequential_step.1} parent=1 // pred_check
      _
    $region51: #{mha_sequential_step.1} parent=1 // pred_check_branch
      %339 = sbr.rel (0) target = $region53
    $region52: #{mha_sequential_step.1} parent=1 // pred_region
      _
    $region53: #{mha_sequential_step.1} parent=1 // pred_fallthru
      _
    // Predicated region
    $region54: #{mha_sequential_step.1} parent=1 // pred_check
      _
    $region55: #{mha_sequential_step.1} parent=1 // pred_check_branch
      %341 = sbr.rel (0) target = $region57
    $region56: #{mha_sequential_step.1} parent=1 // pred_region
      %343 = dma.done [#allocation5], 16
    $region57: #{mha_sequential_step.1} parent=1 // pred_fallthru
      _
    // Predicated region
    $region58: #{mha_sequential_step.1} parent=1 // pred_check
      _
    $region59: #{mha_sequential_step.1} parent=1 // pred_check_branch
      %345 = sbr.rel (0) target = $region61
    $region60: #{mha_sequential_step.1} parent=1 // pred_region
      _
    $region61: #{mha_sequential_step.1} parent=1 // pred_fallthru
      _
    // Predicated region
    $region62: #{mha_sequential_step.1} parent=1 // pred_check
      _
    $region63: #{mha_sequential_step.1} parent=1 // pred_check_branch
      %347 = sbr.rel (0) target = $region65
    $region64: #{mha_sequential_step.1} parent=1 // pred_region
      _
    $region65: #{mha_sequential_step.1} parent=1 // pred_fallthru
      _
    %348 = vsyncpa [#allocation4], 1
    %349 = vsyncpa [#allocation7], 1
    %350 = vsyncpa [#allocation10], 1
    %351 = vsyncpa [#allocation5], 1

</llo_original>
